<compile_context>
chip_gen: v6e
topology: v6e:2x2x1
jax: 0.10.0
libtpu: 0.0.40
codegen_flags: <defaults>
</compile_context>

<pallas_src>
import functools
from typing import NamedTuple

import jax
import jax.numpy as jnp
from jax.experimental import pallas as pl
from jax.experimental.pallas import tpu as pltpu

_CLAMP_MIN = 1.1754944e-38     # smallest normal f32 (see note above)
_DENOM_FLOOR = 1e-30           # guards padded/fake softmax segments (0/0)
_PAD_LOGIT = -1.0e30           # bias of padded class columns / fake members
_MAX_PACKED_LANES = 1024       # cap on packed member*class width per step


# ---------------------------------------------------------------------------
# Small helpers
# ---------------------------------------------------------------------------
def _round_up(n, m):
    return (n + m - 1) // m * m


def _vmem_capacity_bytes():
    try:
        info = pltpu.get_tpu_info()
        cap = getattr(info, "vmem_capacity_bytes", None)
        if cap:
            return int(cap)
    except Exception:
        pass
    return 64 * 1024 * 1024     # conservative fallback (v7x physical VMEM)


def _vmem_estimate(TB, D, GC_pad, C_pad, group):
    """Rough per-step VMEM footprint (double-buffered inputs, f32 epilogue)."""
    b = 0
    b += 2 * TB * D * 2                  # x tile (bf16)
    b += 2 * D * GC_pad * 2              # packed weight block (bf16)
    b += 2 * GC_pad * 4                  # bias block
    if group > 1:
        b += 2 * GC_pad * GC_pad * 4     # block-diagonal denominator matrix
        b += 2 * GC_pad * C_pad * 4      # stacked class selector matrix
    b += 2 * TB * C_pad * 4              # output block
    b += TB * C_pad * 4                  # accumulator scratch
    return b


def _vmem_limit_bytes(est, cap):
    lim = max(32 * 1024 * 1024, int(est * 1.5) + (4 << 20))
    return int(min(lim, max(16 << 20, cap - (8 << 20))))


def _pick_group(M, C, D, budget):
    """Members packed per grid step along the class/lane axis (VMEM-aware)."""
    best = 1
    C_pad = _round_up(C, 128)
    for g in range(1, M + 1):
        GC_pad = _round_up(g * C, 128)
        if g > 1 and GC_pad > _MAX_PACKED_LANES:
            break
        if _vmem_estimate(256, D, GC_pad, C_pad, g) <= budget:
            best = g
    return best


def _pick_tb(B):
    """Batch tile: up to 256 rows; >=2 parallel tiles when cheap (v7x 2 TCs)."""
    TB = min(256, max(8, _round_up(B, 8)))
    B_pad = _round_up(B, TB)
    if B_pad == TB and TB >= 128 and TB % 16 == 0:
        TB //= 2
    return TB, B_pad


# ---------------------------------------------------------------------------
# Kernels
# ---------------------------------------------------------------------------
def _ensemble_packed_kernel(x_ref, w_ref, b_ref, bd_ref, sm_ref, o_ref,
                            acc_ref, *, num_models):
    """Grid = (batch tiles [parallel], member groups [arbitrary]); group > 1."""
    gi = pl.program_id(1)

    @pl.when(gi == 0)
    def _():
        acc_ref[...] = jnp.zeros_like(acc_ref)

    # One wide bf16 MXU matmul covering `group` members: [TB,D] @ [D,GC_pad].
    logits = jnp.dot(x_ref[...], w_ref[0],
                     preferred_element_type=jnp.float32) + b_ref[0]

    # Lane-dense softmax over the packed member*class axis.  A single global
    # row max is used for stability (mathematically identical to per-member
    # max; only deviates if one member's logits sit ~88 below another's).
    rowmax = jnp.max(logits, axis=-1, keepdims=True)
    e = jnp.exp(logits - rowmax)                         # padded cols -> 0

    # Per-member denominators, broadcast to every lane of the member's
    # segment, via one block-diagonal 0/1 matmul (MXU, otherwise idle here).
    denom = jnp.dot(e, bd_ref[...], preferred_element_type=jnp.float32)
    p = e / jnp.maximum(denom, _DENOM_FLOOR)             # exact divide

    # Sum identical classes across this group's members with one stacked 0/1
    # selector matmul; fake/padded columns have p == 0 and drop out.
    acc_ref[...] += jnp.dot(p, sm_ref[...], preferred_element_type=jnp.float32)

    @pl.when(gi == pl.num_programs(1) - 1)
    def _():
        avg = acc_ref[...] * (1.0 / num_models)
        o_ref[...] = jnp.log(jnp.maximum(avg, _CLAMP_MIN)).astype(o_ref.dtype)


def _ensemble_wide_class_kernel(x_ref, w_ref, b_ref, o_ref, acc_ref, *,
                                num_models):
    """group == 1: one member per step; class axis already lane-padded."""
    gi = pl.program_id(1)

    @pl.when(gi == 0)
    def _():
        acc_ref[...] = jnp.zeros_like(acc_ref)

    logits = jnp.dot(x_ref[...], w_ref[0],
                     preferred_element_type=jnp.float32) + b_ref[0]
    rowmax = jnp.max(logits, axis=-1, keepdims=True)
    e = jnp.exp(logits - rowmax)                 # padded classes (bias -1e30) -> 0
    denom = jnp.sum(e, axis=-1, keepdims=True)
    acc_ref[...] += e / jnp.maximum(denom, _DENOM_FLOOR)

    @pl.when(gi == pl.num_programs(1) - 1)
    def _():
        avg = acc_ref[...] * (1.0 / num_models)
        o_ref[...] = jnp.log(jnp.maximum(avg, _CLAMP_MIN)).astype(o_ref.dtype)


def _single_model_kernel(x_ref, w_ref, b_ref, o_ref):
    """len(models) == 1 path: raw logits, no softmax/log."""
    o_ref[...] = (jnp.dot(x_ref[...], w_ref[0],
                          preferred_element_type=jnp.float32)
                  + b_ref[0]).astype(o_ref.dtype)


# ---------------------------------------------------------------------------
# Packing (call once at weight-load time) + hot-path apply
# ---------------------------------------------------------------------------
class PackedEnsemble(NamedTuple):
    w: jax.Array          # [n_groups, D, GC_pad]  bf16 (zero-padded columns)
    b: jax.Array          # [n_groups, 1, GC_pad]  f32  (-1e30 padded columns)
    blockdiag: jax.Array  # [GC_pad, GC_pad] f32 (0/1), only used if group > 1
    summat: jax.Array     # [GC_pad, C_pad]  f32 (0/1), only used if group > 1
    num_models: int
    num_classes: int
    feature_dim: int
    group: int
    c_pad: int
    gc_pad: int


def pack_ensemble(weights, biases):
    """weights: [M, D, C], biases: [M, C] -> PackedEnsemble (do this ONCE)."""
    M, D, C = weights.shape
    assert M > 1 and biases.shape == (M, C)

    budget = int(_vmem_capacity_bytes() * 0.55)
    C_pad = _round_up(C, 128)
    group = _pick_group(M, C, D, budget)
    n_groups = pl.cdiv(M, group)
    M_pad = n_groups * group
    GC = group * C
    GC_pad = _round_up(GC, 128)

    w = weights.astype(jnp.bfloat16)
    b = biases.astype(jnp.float32)
    if M_pad != M:                      # fake members: zero weights, -inf bias
        w = jnp.concatenate(
            [w, jnp.zeros((M_pad - M, D, C), jnp.bfloat16)], axis=0)
        b = jnp.concatenate(
            [b, jnp.full((M_pad - M, C), _PAD_LOGIT, jnp.float32)], axis=0)

    # [M_pad, D, C] -> [n_groups, D, group*C] (members packed along lanes).
    w = w.reshape(n_groups, group, D, C).transpose(0, 2, 1, 3)
    w = w.reshape(n_groups, D, GC)
    b = b.reshape(n_groups, 1, GC)
    if GC_pad != GC:                    # lane padding: zero weights, -inf bias
        w = jnp.pad(w, ((0, 0), (0, 0), (0, GC_pad - GC)))
        b = jnp.pad(b, ((0, 0), (0, 0), (0, GC_pad - GC)),
                    constant_values=_PAD_LOGIT)

    if group > 1:
        col = jnp.arange(GC_pad)
        blockdiag = (col[:, None] // C == col[None, :] // C).astype(jnp.float32)
        summat = (col[:, None] % C == jnp.arange(C_pad)[None, :]).astype(
            jnp.float32)
    else:
        blockdiag = jnp.zeros((1, 1), jnp.float32)
        summat = jnp.zeros((1, 1), jnp.float32)

    return PackedEnsemble(w, b, blockdiag, summat, M, C, D, group, C_pad,
                          GC_pad)


def ensemble_apply(packed, x):
    """Hot path: x [B, D] -> log(mean softmax) [B, C] (f32)."""
    B, D = x.shape
    assert D == packed.feature_dim
    M, C = packed.num_models, packed.num_classes
    C_pad, GC_pad, group = packed.c_pad, packed.gc_pad, packed.group
    n_groups = packed.w.shape[0]

    x_bf = x.astype(jnp.bfloat16)
    TB, B_pad = _pick_tb(B)
    if B_pad != B:
        x_bf = jnp.zeros((B_pad, D), jnp.bfloat16).at[:B].set(x_bf)
    n_btiles = B_pad // TB

    est = _vmem_estimate(TB, D, GC_pad, C_pad, group)
    cparams = pltpu.CompilerParams(
        dimension_semantics=("parallel", "arbitrary"),
        vmem_limit_bytes=_vmem_limit_bytes(est, _vmem_capacity_bytes()))

    if group > 1:
        kernel = functools.partial(_ensemble_packed_kernel, num_models=M)
        in_specs = [
            pl.BlockSpec((TB, D), lambda bi, gi: (bi, 0)),
            pl.BlockSpec((1, D, GC_pad), lambda bi, gi: (gi, 0, 0)),
            pl.BlockSpec((1, 1, GC_pad), lambda bi, gi: (gi, 0, 0)),
            pl.BlockSpec((GC_pad, GC_pad), lambda bi, gi: (0, 0)),
            pl.BlockSpec((GC_pad, C_pad), lambda bi, gi: (0, 0)),
        ]
        args = (x_bf, packed.w, packed.b, packed.blockdiag, packed.summat)
    else:
        kernel = functools.partial(_ensemble_wide_class_kernel, num_models=M)
        in_specs = [
            pl.BlockSpec((TB, D), lambda bi, gi: (bi, 0)),
            pl.BlockSpec((1, D, GC_pad), lambda bi, gi: (gi, 0, 0)),
            pl.BlockSpec((1, 1, GC_pad), lambda bi, gi: (gi, 0, 0)),
        ]
        args = (x_bf, packed.w, packed.b)

    # TODO(synk): when n_groups > 1 AND n_btiles > 1 the packed weights are
    # re-streamed per batch tile; a (groups-outer, batch-inner) grid with a
    # full-batch VMEM accumulator would stream them exactly once.
    out = pl.pallas_call(
        kernel,
        out_shape=jax.ShapeDtypeStruct((B_pad, C_pad), jnp.float32),
        grid_spec=pltpu.PrefetchScalarGridSpec(
            num_scalar_prefetch=0,
            grid=(n_btiles, n_groups),
            in_specs=in_specs,
            out_specs=pl.BlockSpec((TB, C_pad), lambda bi, gi: (bi, 0)),
            scratch_shapes=[pltpu.VMEM((TB, C_pad), jnp.float32)]),
        compiler_params=cparams,
    )(*args)
    return out[:B, :C]


def _single_model_forward(x, weights, biases):
    """M == 1 path: raw logits of the single member (lane-dense output)."""
    B, D = x.shape
    _, _, C = weights.shape
    C_pad = _round_up(C, 128)
    TB, B_pad = _pick_tb(B)

    x_bf = x.astype(jnp.bfloat16)
    if B_pad != B:
        x_bf = jnp.zeros((B_pad, D), jnp.bfloat16).at[:B].set(x_bf)
    w_p = jnp.pad(weights.astype(jnp.bfloat16),
                  ((0, 0), (0, 0), (0, C_pad - C)))
    b_p = jnp.pad(biases.astype(jnp.float32),
                  ((0, 0), (0, C_pad - C))).reshape(1, 1, C_pad)

    est = _vmem_estimate(TB, D, C_pad, C_pad, 1)
    out = pl.pallas_call(
        _single_model_kernel,
        out_shape=jax.ShapeDtypeStruct((B_pad, C_pad), jnp.float32),
        grid_spec=pltpu.PrefetchScalarGridSpec(
            num_scalar_prefetch=0,
            grid=(B_pad // TB,),
            in_specs=[pl.BlockSpec((TB, D), lambda bi: (bi, 0)),
                      pl.BlockSpec((1, D, C_pad), lambda bi: (0, 0, 0)),
                      pl.BlockSpec((1, 1, C_pad), lambda bi: (0, 0, 0))],
            out_specs=pl.BlockSpec((TB, C_pad), lambda bi: (bi, 0))),
        compiler_params=pltpu.CompilerParams(
            dimension_semantics=("parallel",),
            vmem_limit_bytes=_vmem_limit_bytes(est, _vmem_capacity_bytes())),
    )(x_bf, w_p, b_p)
    return out[:B, :C]


def ensemble_forward(x, weights, biases):
    """Convenience wrapper.  In real use, call pack_ensemble() once and reuse
    the PackedEnsemble across batches (packing is off the hot path)."""
    if weights.shape[0] == 1:
        return _single_model_forward(x, weights, biases)
    packed = pack_ensemble(weights, biases)
    return ensemble_apply(packed, x)


# ---------------------------------------------------------------------------
# Reference + test
# ---------------------------------------------------------------------------
def _reference(x, weights, biases):
    # Emulates the kernel's bf16 matmul operands; softmax/mean/log in f32.
    xb = x.astype(jnp.bfloat16).astype(jnp.float32)
    wb = weights.astype(jnp.bfloat16).astype(jnp.float32)
    logits = jnp.einsum("bd,mdc->mbc", xb, wb) + biases[:, None, :].astype(
        jnp.float32)
    if weights.shape[0] > 1:
        p = jax.nn.softmax(logits, axis=-1).mean(axis=0)
        return jnp.log(jnp.maximum(p, _CLAMP_MIN))
    return logits[0]


def _check(out, ref, name, tol=1e-2):
    err = float(jnp.max(jnp.abs(out - ref)))
    assert out.shape == ref.shape, (name, out.shape, ref.shape)
    assert err < tol, (name, err)


if __name__ == "__main__":
    key = jax.random.PRNGKey(0)
    kx, kw, kb, kw2, kb2, kw3, kb3 = jax.random.split(key, 7)

    # -- M > 1: whole ensemble packed into a single wide matmul step ---------
    B, D, C, M = 8, 32, 16, 3
    x = jax.random.normal(kx, (B, D), dtype=jnp.float32)
    w = 0.1 * jax.random.normal(kw, (M, D, C), dtype=jnp.float32)
    b = 0.05 * jax.random.normal(kb, (M, C), dtype=jnp.float32)
    out = jax.block_until_ready(ensemble_forward(x, w, b))
    _check(out, _reference(x, w, b), "m3")

    # -- M == 1: raw logits of the single member ------------------------------
    out1 = jax.block_until_ready(ensemble_forward(x, w[:1], b[:1]))
    _check(out1, _reference(x, w[:1], b[:1]), "m1")

    # -- Large ensemble: 2 member groups + masked fake-member padding --------
    M2 = 100                         # group=64 -> 2 groups, 28 fake members
    w2 = 0.1 * jax.random.normal(kw2, (M2, D, C), dtype=jnp.float32)
    b2 = 0.05 * jax.random.normal(kb2, (M2, C), dtype=jnp.float32)
    out2 = jax.block_until_ready(ensemble_forward(x, w2, b2))
    _check(out2, _reference(x, w2, b2), "m100")

    # -- Wide class axis: group == 1 (row-sum softmax) path -------------------
    M3, C3 = 3, 640
    w3 = 0.1 * jax.random.normal(kw3, (M3, D, C3), dtype=jnp.float32)
    b3 = 0.05 * jax.random.normal(kb3, (M3, C3), dtype=jnp.float32)
    out3 = jax.block_until_ready(ensemble_forward(x, w3, b3))
    _check(out3, _reference(x, w3, b3), "wide_c")

    print("KERNEL_OK")
</pallas_src>

<mosaic_0001>
module attributes {stable_mosaic.version = 11 : i64} {
  func.func @_ensemble_packed_kernel(%arg0: i32, %arg1: i32, %arg2: memref<8x32xbf16, #tpu.memory_space<vmem>>, %arg3: memref<1x32x128xbf16, #tpu.memory_space<vmem>>, %arg4: memref<1x1x128xf32, #tpu.memory_space<vmem>>, %arg5: memref<128x128xf32, #tpu.memory_space<vmem>>, %arg6: memref<128x128xf32, #tpu.memory_space<vmem>>, %arg7: memref<8x128xf32, #tpu.memory_space<vmem>>, %arg8: memref<8x128xf32, #tpu.memory_space<vmem>>) attributes {dimension_semantics = [#tpu.dimension_semantics<parallel>, #tpu.dimension_semantics<arbitrary>], iteration_bounds = array<i64: 1, 1>, scalar_prefetch = 0 : i64, scratch_operands = 1 : i64, tpu.core_type = #tpu.core_type<tc>, window_params = [{transform_indices = @transform_0, window_bounds = array<i64: 8, 32>}, {transform_indices = @transform_1, window_bounds = array<i64: 1, 32, 128>}, {transform_indices = @transform_2, window_bounds = array<i64: 1, 1, 128>}, {pipeline_mode = #tpu.pipeline_mode<synchronous>, transform_indices = @transform_3, window_bounds = array<i64: 128, 128>}, {pipeline_mode = #tpu.pipeline_mode<synchronous>, transform_indices = @transform_4, window_bounds = array<i64: 128, 128>}, {transform_indices = @transform_5, window_bounds = array<i64: 8, 128>}]} {
    %c0_i32 = arith.constant 0 : i32
    %0 = arith.cmpi eq, %arg1, %c0_i32 : i32
    %1 = arith.extui %0 : i1 to i32
    %c0_i32_0 = arith.constant 0 : i32
    %2 = arith.cmpi ne, %1, %c0_i32_0 : i32
    scf.if %2 {
      %cst_22 = arith.constant 0.000000e+00 : f32
      %29 = vector.broadcast %cst_22 : f32 to vector<8x128xf32>
      %c0_23 = arith.constant 0 : index
      %c0_24 = arith.constant 0 : index
      %30 = vector.load %arg8[%c0_23, %c0_24] : memref<8x128xf32, #tpu.memory_space<vmem>>, vector<8x128xf32>
      tpu.vector_store %arg8[%c0_23, %c0_24], %29 {strides = array<i32>} : memref<8x128xf32, #tpu.memory_space<vmem>>, vector<8x128xf32>,
    } else {
    }
    %c0 = arith.constant 0 : index
    %c0_1 = arith.constant 0 : index
    %3 = vector.load %arg2[%c0, %c0_1] : memref<8x32xbf16, #tpu.memory_space<vmem>>, vector<8x32xbf16>
    %c0_2 = arith.constant 0 : index
    %c0_3 = arith.constant 0 : index
    %c0_4 = arith.constant 0 : index
    %4 = vector.load %arg3[%c0_2, %c0_3, %c0_4] : memref<1x32x128xbf16, #tpu.memory_space<vmem>>, vector<1x32x128xbf16>
    %5 = vector.shape_cast %4 : vector<1x32x128xbf16> to vector<32x128xbf16>
    %cst = arith.constant dense<0.000000e+00> : vector<8x128xf32>
    %6 = tpu.matmul %3, %5, %cst {dimension_numbers = #tpu.dot_dimension_numbers<[1], [0], [0], [1], [0, 0, 1, 1], [], []>} : vector<8x32xbf16>, vector<32x128xbf16>, vector<8x128xf32> -> vector<8x128xf32>
    %c0_5 = arith.constant 0 : index
    %c0_6 = arith.constant 0 : index
    %c0_7 = arith.constant 0 : index
    %7 = vector.load %arg4[%c0_5, %c0_6, %c0_7] : memref<1x1x128xf32, #tpu.memory_space<vmem>>, vector<1x1x128xf32>
    %8 = vector.shape_cast %7 : vector<1x1x128xf32> to vector<1x128xf32>
    %9 = vector.broadcast %8 : vector<1x128xf32> to vector<8x128xf32>
    %10 = arith.addf %6, %9 : vector<8x128xf32>
    %cst_8 = arith.constant dense<0xFF800000> : vector<8xf32>
    %11 = vector.multi_reduction <maximumf>, %10, %cst_8 [1] : vector<8x128xf32> to vector<8xf32>
    %12 = vector.shape_cast %11 : vector<8xf32> to vector<8x1xf32>
    %13 = vector.broadcast %12 : vector<8x1xf32> to vector<8x128xf32>
    %14 = arith.subf %10, %13 : vector<8x128xf32>
    %15 = math.exp %14 : vector<8x128xf32>
    %c0_9 = arith.constant 0 : index
    %c0_10 = arith.constant 0 : index
    %16 = vector.load %arg5[%c0_9, %c0_10] : memref<128x128xf32, #tpu.memory_space<vmem>>, vector<128x128xf32>
    %cst_11 = arith.constant dense<0.000000e+00> : vector<8x128xf32>
    %17 = tpu.matmul %15, %16, %cst_11 {dimension_numbers = #tpu.dot_dimension_numbers<[1], [0], [0], [1], [0, 0, 1, 1], [], []>} : vector<8x128xf32>, vector<128x128xf32>, vector<8x128xf32> -> vector<8x128xf32>
    %cst_12 = arith.constant 1.000000e-30 : f32
    %18 = vector.broadcast %cst_12 : f32 to vector<8x128xf32>
    %19 = arith.maximumf %17, %18 : vector<8x128xf32>
    %20 = arith.divf %15, %19 : vector<8x128xf32>
    %c0_13 = arith.constant 0 : index
    %c0_14 = arith.constant 0 : index
    %21 = vector.load %arg8[%c0_13, %c0_14] : memref<8x128xf32, #tpu.memory_space<vmem>>, vector<8x128xf32>
    %c0_15 = arith.constant 0 : index
    %c0_16 = arith.constant 0 : index
    %22 = vector.load %arg6[%c0_15, %c0_16] : memref<128x128xf32, #tpu.memory_space<vmem>>, vector<128x128xf32>
    %cst_17 = arith.constant dense<0.000000e+00> : vector<8x128xf32>
    %23 = tpu.matmul %20, %22, %cst_17 {dimension_numbers = #tpu.dot_dimension_numbers<[1], [0], [0], [1], [0, 0, 1, 1], [], []>} : vector<8x128xf32>, vector<128x128xf32>, vector<8x128xf32> -> vector<8x128xf32>
    %24 = arith.addf %21, %23 : vector<8x128xf32>
    %c0_18 = arith.constant 0 : index
    %c0_19 = arith.constant 0 : index
    %25 = vector.load %arg8[%c0_18, %c0_19] : memref<8x128xf32, #tpu.memory_space<vmem>>, vector<8x128xf32>
    tpu.vector_store %arg8[%c0_18, %c0_19], %24 {strides = array<i32>} : memref<8x128xf32, #tpu.memory_space<vmem>>, vector<8x128xf32>,
    %c0_i32_20 = arith.constant 0 : i32
    %26 = arith.cmpi eq, %arg1, %c0_i32_20 : i32
    %27 = arith.extui %26 : i1 to i32
    %c0_i32_21 = arith.constant 0 : i32
    %28 = arith.cmpi ne, %27, %c0_i32_21 : i32
    scf.if %28 {
      %c0_22 = arith.constant 0 : index
      %c0_23 = arith.constant 0 : index
      %29 = vector.load %arg8[%c0_22, %c0_23] : memref<8x128xf32, #tpu.memory_space<vmem>>, vector<8x128xf32>
      %cst_24 = arith.constant 0.333333343 : f32
      %30 = vector.broadcast %cst_24 : f32 to vector<8x128xf32>
      %31 = arith.mulf %29, %30 : vector<8x128xf32>
      %cst_25 = arith.constant 1.17549435E-38 : f32
      %32 = vector.broadcast %cst_25 : f32 to vector<8x128xf32>
      %33 = arith.maximumf %31, %32 : vector<8x128xf32>
      %34 = math.log %33 : vector<8x128xf32>
      %c0_26 = arith.constant 0 : index
      %c0_27 = arith.constant 0 : index
      %35 = vector.load %arg7[%c0_26, %c0_27] : memref<8x128xf32, #tpu.memory_space<vmem>>, vector<8x128xf32>
      tpu.vector_store %arg7[%c0_26, %c0_27], %34 {strides = array<i32>} : memref<8x128xf32, #tpu.memory_space<vmem>>, vector<8x128xf32>,
    } else {
    }
    return
  }
  func.func @transform_0(%arg0: i32, %arg1: i32) -> (i32, i32) {
    %c0_i32 = arith.constant 0 : i32
    %c0_i32_0 = arith.constant 0 : i32
    return %arg0, %c0_i32 : i32, i32
  }
  func.func @transform_1(%arg0: i32, %arg1: i32) -> (i32, i32, i32) {
    %c0_i32 = arith.constant 0 : i32
    %c0_i32_0 = arith.constant 0 : i32
    %c0_i32_1 = arith.constant 0 : i32
    return %arg1, %c0_i32, %c0_i32_0 : i32, i32, i32
  }
  func.func @transform_2(%arg0: i32, %arg1: i32) -> (i32, i32, i32) {
    %c0_i32 = arith.constant 0 : i32
    %c0_i32_0 = arith.constant 0 : i32
    %c0_i32_1 = arith.constant 0 : i32
    return %arg1, %c0_i32, %c0_i32_0 : i32, i32, i32
  }
  func.func @transform_3(%arg0: i32, %arg1: i32) -> (i32, i32) {
    %c0_i32 = arith.constant 0 : i32
    %c0_i32_0 = arith.constant 0 : i32
    %c0_i32_1 = arith.constant 0 : i32
    return %c0_i32, %c0_i32_0 : i32, i32
  }
  func.func @transform_4(%arg0: i32, %arg1: i32) -> (i32, i32) {
    %c0_i32 = arith.constant 0 : i32
    %c0_i32_0 = arith.constant 0 : i32
    %c0_i32_1 = arith.constant 0 : i32
    return %c0_i32, %c0_i32_0 : i32, i32
  }
  func.func @transform_5(%arg0: i32, %arg1: i32) -> (i32, i32) {
    %c0_i32 = arith.constant 0 : i32
    %c0_i32_0 = arith.constant 0 : i32
    return %arg0, %c0_i32 : i32, i32
  }
}

</mosaic_0001>

<llo_original>
// kernel: tpu_custom_call.1
$region0: #{tpu_custom_call.1}
  #allocation0 [shape = 'u32[]', space=smem, size = 0x4, offset = 0x4, fixed_abs, tag = 'smem constant byte address 0x4 - core index']
  #allocation1 [shape = 'u32[144,128]{1,0:T(1,128)}', space=vmem, size = 0x12000, scoped, tag = 'internal scratch']
  #allocation2 [shape = 'f32[8,128]{1,0:T(8,128)}', space=vmem, size = 0x1000, scoped, tag = 'scratch operand']
  %s0 = inlined_call_operand.hbm [shape: bf16[8,32], index: 0, kind: input, shape index: {}]
  %s1 = inlined_call_operand.hbm [shape: bf16[1,32,128], index: 1, kind: input, shape index: {}]
  %s2 = inlined_call_operand.vmem [shape: f32[1,1,128], index: 2, kind: input, shape index: {}]
  %s3 = inlined_call_operand.hbm [shape: f32[128,128], index: 3, kind: input, shape index: {}]
  %s4 = inlined_call_operand.hbm [shape: f32[128,128], index: 4, kind: input, shape index: {}]
  %s5 = inlined_call_operand.hbm [shape: f32[8,128], index: 5, kind: output, shape index: {}]
  %s6 = sld [smem:[#allocation0]]
  $region54: #{tpu_custom_call.1} parent=0
    _
  %s8 = ssub.s32 1, %s6
  %s9 = scalar_select 0, %s8, %s6
  $region1: #{tpu_custom_call.1} parent=0
    #allocation3 [shape = 'u8[2048]{0}', space=vmem, size = 0x800, scoped, tag = 'input window, operand 0, single buffered']
    #allocation4 [shape = 's32[1]{0}', space=sflag, size = 0x4, scoped, tag = 'scoped memory for tpu_custom_call.1']
    #allocation5 [shape = 's32[1]{0}', space=sflag, size = 0x4, scoped, tag = 'scoped memory for tpu_custom_call.1']
    #allocation6 [shape = 'u8[8192]{0}', space=vmem, size = 0x2000, scoped, tag = 'input window, operand 1, single buffered']
    #allocation7 [shape = 's32[1]{0}', space=sflag, size = 0x4, scoped, tag = 'scoped memory for tpu_custom_call.1']
    #allocation8 [shape = 'u8[65536]{0}', space=vmem, size = 0x10000, scoped, tag = 'input window, operand 3, single buffered']
    #allocation9 [shape = 'u8[65536]{0}', space=vmem, size = 0x10000, scoped, tag = 'input window, operand 4, single buffered']
    #allocation10 [shape = 's32[1]{0}', space=sflag, size = 0x4, scoped, tag = 'scoped memory for tpu_custom_call.1']
    #allocation11 [shape = 'u8[4096]{0}', space=vmem, size = 0x1000, scoped, tag = 'output window, operand 0, single buffered']
    %10 = vsyncpa [#allocation4], 0
    %11 = vsyncpa [#allocation7], 0
    %12 = vsyncpa [#allocation10], 0
    %13 = vsyncpa [#allocation5], 0
    // Predicated region
    $region2: #{tpu_custom_call.1} parent=1 // pred_check
      _
    $region3: #{tpu_custom_call.1} parent=1 // pred_check_branch
      %15 = sbr.rel (0) target = $region5
    $region4: #{tpu_custom_call.1} parent=1 // pred_region
      %s17 = ssub.s32 64, 64
      %18 = vsyncadd [#allocation4], %s17
      %s20 = sshll.u32 [#allocation3], 4
      %s21 = int_to_ptr.vmem [resolvable:$true] %s20
      %23 = dma.hbm_to_vmem [thread:$0]  %s0, 64, %s21, [#allocation4]
    $region5: #{tpu_custom_call.1} parent=1 // pred_fallthru
      _
    // Predicated region
    $region6: #{tpu_custom_call.1} parent=1 // pred_check
      _
    $region7: #{tpu_custom_call.1} parent=1 // pred_check_branch
      %25 = sbr.rel (0) target = $region9
    $region8: #{tpu_custom_call.1} parent=1 // pred_region
      %s27 = ssub.s32 256, 256
      %28 = vsyncadd [#allocation7], %s27
      %s29 = sshll.u32 [#allocation6], 4
      %s30 = int_to_ptr.vmem [resolvable:$true] %s29
      %35 = dma.hbm_to_vmem [thread:$0]  %s1, 256, %s30, [#allocation7], 64, 64, 4
    $region9: #{tpu_custom_call.1} parent=1 // pred_fallthru
      _
    // Predicated region
    $region10: #{tpu_custom_call.1} parent=1 // pred_check
      _
    $region11: #{tpu_custom_call.1} parent=1 // pred_check_branch
      %37 = sbr.rel (0) target = $region13
    $region12: #{tpu_custom_call.1} parent=1 // pred_region
      _
    $region13: #{tpu_custom_call.1} parent=1 // pred_fallthru
      _
    // Predicated region
    $region14: #{tpu_custom_call.1} parent=1 // pred_check
      _
    $region15: #{tpu_custom_call.1} parent=1 // pred_check_branch
      %39 = sbr.rel (0) target = $region17
    $region16: #{tpu_custom_call.1} parent=1 // pred_region
      %s41 = ssub.s32 2048, 2048
      %42 = vsyncadd [#allocation7], %s41
      %s43 = sshll.u32 [#allocation8], 4
      %s44 = int_to_ptr.vmem [resolvable:$true] %s43
      %49 = dma.hbm_to_vmem [thread:$0]  %s3, 2048, %s44, [#allocation7], 128, 128, 8
    $region17: #{tpu_custom_call.1} parent=1 // pred_fallthru
      _
    // Predicated region
    $region18: #{tpu_custom_call.1} parent=1 // pred_check
      _
    $region19: #{tpu_custom_call.1} parent=1 // pred_check_branch
      %51 = sbr.rel (0) target = $region21
    $region20: #{tpu_custom_call.1} parent=1 // pred_region
      %s53 = ssub.s32 2048, 2048
      %54 = vsyncadd [#allocation10], %s53
      %s55 = sshll.u32 [#allocation9], 4
      %s56 = int_to_ptr.vmem [resolvable:$true] %s55
      %61 = dma.hbm_to_vmem [thread:$0]  %s4, 2048, %s56, [#allocation10], 128, 128, 8
    $region21: #{tpu_custom_call.1} parent=1 // pred_fallthru
      _
    // Predicated region
    $region22: #{tpu_custom_call.1} parent=1 // pred_check
      _
    $region23: #{tpu_custom_call.1} parent=1 // pred_check_branch
      %63 = sbr.rel (0) target = $region25
    $region24: #{tpu_custom_call.1} parent=1 // pred_region
      %64 = dma.done [#allocation4], 64
    $region25: #{tpu_custom_call.1} parent=1 // pred_fallthru
      _
    // Predicated region
    $region26: #{tpu_custom_call.1} parent=1 // pred_check
      _
    $region27: #{tpu_custom_call.1} parent=1 // pred_check_branch
      %66 = sbr.rel (0) target = $region29
    $region28: #{tpu_custom_call.1} parent=1 // pred_region
      %67 = dma.done [#allocation7], 256
    $region29: #{tpu_custom_call.1} parent=1 // pred_fallthru
      _
    // Predicated region
    $region30: #{tpu_custom_call.1} parent=1 // pred_check
      _
    $region31: #{tpu_custom_call.1} parent=1 // pred_check_branch
      %69 = sbr.rel (0) target = $region33
    $region32: #{tpu_custom_call.1} parent=1 // pred_region
      %70 = dma.done [#allocation7], 2048
    $region33: #{tpu_custom_call.1} parent=1 // pred_fallthru
      _
    // Predicated region
    $region34: #{tpu_custom_call.1} parent=1 // pred_check
      _
    $region35: #{tpu_custom_call.1} parent=1 // pred_check_branch
      %72 = sbr.rel (0) target = $region37
    $region36: #{tpu_custom_call.1} parent=1 // pred_region
      %73 = dma.done [#allocation10], 2048
    $region37: #{tpu_custom_call.1} parent=1 // pred_fallthru
      _
    %p75 = scmp.eq.s32.totalorder 0, 0
    // Predicated region
    $region38: #{tpu_custom_call.1} parent=1 // pred_check
      %p76 = pneg %p75
    $region39: #{tpu_custom_call.1} parent=1 // pred_check_branch
      %78 = sbr.rel (%p76) target = $region41
    $region40: #{tpu_custom_call.1} parent=1 // pred_region
      %79 = vst [vmem:[#allocation2] sm:$0xff] 0.0
    $region41: #{tpu_custom_call.1} parent=1 // pred_fallthru
      _
    %v80 = vld [vmem:[#allocation3] sm:$0xf]
    %v81 = vld [vmem:[#allocation6] sm:$0xf]
    %v82 = vld [vmem:[#allocation6 + $0x4] sm:$0xf]
    %v83 = vld [vmem:[#allocation6 + $0x8] sm:$0xf]
    %v84 = vld [vmem:[#allocation6 + $0xc] sm:$0xf]
    %v85 = vld [vmem:[%s2] sm:$0x1]
    %v87 = vlaneseq
    %v88 = vshrl.u32 %v87, 7
    %v89 = vsub.s32 0, %v88
    %v90 = vrot.slane %v85, %v89
    %v96 = vunpack.c.l.b16 %v81
    %v97 = vunpack.c.l.b16 %v82
    %v98 = vunpack.c.l.b16 %v83
    %v99 = vunpack.c.l.b16 %v84
    %v100 = vpack.c.b16 %v97, %v96
    %v101 = vpack.c.b16 %v99, %v98
    %vm104 = vcmask 261120
    %v106 = vsel %vm104, %v80, 0
    %108 = vmatprep.subr.bf16.mxu0 0
    %109 = vmatpush1.bf16.msra.mxu0 0
    %110 = vmatprep.subr.bf16.mxu0 0
    %111 = vmatpush1.bf16.msra.mxu0 0
    %112 = vmatprep.subr.bf16.mxu0 0
    %113 = vmatpush1.bf16.msra.mxu0 0
    %114 = vmatprep.subr.bf16.mxu0 0
    %115 = vmatpush1.bf16.msra.mxu0 0
    %116 = vmatprep.subr.bf16.mxu0 0
    %117 = vmatpush1.bf16.msra.mxu0 0
    %118 = vmatprep.subr.bf16.mxu0 0
    %119 = vmatpush1.bf16.msra.mxu0 0
    %120 = vmatprep.subr.bf16.mxu0 0
    %121 = vmatpush1.bf16.msra.mxu0 %v101
    %122 = vmatprep.subr.bf16.mxu0 0
    %123 = vmatpush1.bf16.msra.mxu0 %v100
    %124 = vmatprep.subr.bf16.mxu0 0
    %125 = vmatpush2.bf16.msra.mxu0 0
    %126 = vmatprep.subr.bf16.mxu0 0
    %127 = vmatpush2.bf16.msra.mxu0 0
    %128 = vmatprep.subr.bf16.mxu0 0
    %129 = vmatpush2.bf16.msra.mxu0 0
    %130 = vmatprep.subr.bf16.mxu0 0
    %131 = vmatpush2.bf16.msra.mxu0 0
    %132 = vmatprep.subr.bf16.mxu0 0
    %133 = vmatpush2.bf16.msra.mxu0 0
    %134 = vmatprep.subr.bf16.mxu0 0
    %135 = vmatpush2.bf16.msra.mxu0 0
    %136 = vmatprep.subr.bf16.mxu0 0
    %137 = vmatpush2.bf16.msra.mxu0 0
    %138 = vmatprep.subr.bf16.mxu0 0
    %139 = vmatpush2.bf16.msra.mxu0 0
    %140 = vmatprep.mubr.bf16.mxu0 0
    %141 = vmatmul.mubr.bf16.gmra.mxu0 %v106
    %v142 = vpop.f32.mrf.mxu0
    %v143 = vadd.f32 %v90, %v142
    %v144 = vpop.f32.mrf.mxu0
    %v145 = vpop.f32.mrf.mxu0
    %v146 = vpop.f32.mrf.mxu0
    %147 = vdwg.mxu0
    %148 = vmax.xlane.f32.xlu0 %v143
    %v149 = vpop.xlane.xlu0 %148
    %v150 = vsub.f32 %v143, %v149
    %v151 = vmul.f32 %v150, 1.442695
    %v152 = vpow.pop %v151
    %v153 = vld [vmem:[#allocation8] sm:$0xff]
    %v154 = vld [vmem:[#allocation8 + $0x8] sm:$0xff]
    %v155 = vld [vmem:[#allocation8 + $0x10] sm:$0xff]
    %v156 = vld [vmem:[#allocation8 + $0x18] sm:$0xff]
    %v157 = vld [vmem:[#allocation8 + $0x20] sm:$0xff]
    %v158 = vld [vmem:[#allocation8 + $0x28] sm:$0xff]
    %v159 = vld [vmem:[#allocation8 + $0x30] sm:$0xff]
    %v160 = vld [vmem:[#allocation8 + $0x38] sm:$0xff]
    %v161 = vld [vmem:[#allocation8 + $0x40] sm:$0xff]
    %v162 = vld [vmem:[#allocation8 + $0x48] sm:$0xff]
    %v163 = vld [vmem:[#allocation8 + $0x50] sm:$0xff]
    %v164 = vld [vmem:[#allocation8 + $0x58] sm:$0xff]
    %v165 = vld [vmem:[#allocation8 + $0x60] sm:$0xff]
    %v166 = vld [vmem:[#allocation8 + $0x68] sm:$0xff]
    %v167 = vld [vmem:[#allocation8 + $0x70] sm:$0xff]
    %v168 = vld [vmem:[#allocation8 + $0x78] sm:$0xff]
    %169 = vmatprep.subr.mxu0 0.0
    %170 = vmatpush1.msra.mxu0 %v168
    %171 = vmatprep.subr.mxu0 0.0
    %172 = vmatpush1.msra.mxu0 %v167
    %173 = vmatprep.subr.mxu0 0.0
    %174 = vmatpush1.msra.mxu0 %v166
    %175 = vmatprep.subr.mxu0 0.0
    %176 = vmatpush1.msra.mxu0 %v165
    %177 = vmatprep.subr.mxu0 0.0
    %178 = vmatpush1.msra.mxu0 %v164
    %179 = vmatprep.subr.mxu0 0.0
    %180 = vmatpush1.msra.mxu0 %v163
    %181 = vmatprep.subr.mxu0 0.0
    %182 = vmatpush1.msra.mxu0 %v162
    %183 = vmatprep.subr.mxu0 0.0
    %184 = vmatpush1.msra.mxu0 %v161
    %185 = vmatprep.subr.mxu0 0.0
    %186 = vmatpush1.msra.mxu0 %v160
    %187 = vmatprep.subr.mxu0 0.0
    %188 = vmatpush1.msra.mxu0 %v159
    %189 = vmatprep.subr.mxu0 0.0
    %190 = vmatpush1.msra.mxu0 %v158
    %191 = vmatprep.subr.mxu0 0.0
    %192 = vmatpush1.msra.mxu0 %v157
    %193 = vmatprep.subr.mxu0 0.0
    %194 = vmatpush1.msra.mxu0 %v156
    %195 = vmatprep.subr.mxu0 0.0
    %196 = vmatpush1.msra.mxu0 %v155
    %197 = vmatprep.subr.mxu0 0.0
    %198 = vmatpush1.msra.mxu0 %v154
    %199 = vmatprep.subr.mxu0 0.0
    %200 = vmatpush1.msra.mxu0 %v153
    %201 = vmatprep.subr.mxu0 0.0
    %202 = vmatpush2.msra.mxu0 0.0
    %203 = vmatprep.subr.mxu0 0.0
    %204 = vmatpush2.msra.mxu0 0.0
    %205 = vmatprep.subr.mxu0 0.0
    %206 = vmatpush2.msra.mxu0 0.0
    %207 = vmatprep.subr.mxu0 0.0
    %208 = vmatpush2.msra.mxu0 0.0
    %209 = vmatprep.subr.mxu0 0.0
    %210 = vmatpush2.msra.mxu0 0.0
    %211 = vmatprep.subr.mxu0 0.0
    %212 = vmatpush2.msra.mxu0 0.0
    %213 = vmatprep.subr.mxu0 0.0
    %214 = vmatpush2.msra.mxu0 0.0
    %215 = vmatprep.subr.mxu0 0.0
    %216 = vmatpush2.msra.mxu0 0.0
    %217 = vmatprep.subr.mxu0 0.0
    %218 = vmatpush2.msra.mxu0 0.0
    %219 = vmatprep.subr.mxu0 0.0
    %220 = vmatpush2.msra.mxu0 0.0
    %221 = vmatprep.subr.mxu0 0.0
    %222 = vmatpush2.msra.mxu0 0.0
    %223 = vmatprep.subr.mxu0 0.0
    %224 = vmatpush2.msra.mxu0 0.0
    %225 = vmatprep.subr.mxu0 0.0
    %226 = vmatpush2.msra.mxu0 0.0
    %227 = vmatprep.subr.mxu0 0.0
    %228 = vmatpush2.msra.mxu0 0.0
    %229 = vmatprep.subr.mxu0 0.0
    %230 = vmatpush2.msra.mxu0 0.0
    %231 = vmatprep.subr.mxu0 0.0
    %232 = vmatpush2.msra.mxu0 0.0
    %233 = vmatprep.mubr.f32.mxu0 0.0
    %234 = vmatmul.mubr.f32.gmra.mxu0 %v152
    %v235 = vpop.f32.mrf.mxu0
    %v236 = vadd.f32 0.0, %v235
    %v237 = vpop.f32.mrf.mxu0
    %238 = vdwg.mxu0
    %v239 = vmax.f32 %v236, 1e-30
    %v240 = vrcp.pop %v239
    %v241 = vmul.f32 %v152, %v240
    %v242 = vld [vmem:[#allocation2] sm:$0xff]
    %v243 = vld [vmem:[#allocation9] sm:$0xff]
    %v244 = vld [vmem:[#allocation9 + $0x8] sm:$0xff]
    %v245 = vld [vmem:[#allocation9 + $0x10] sm:$0xff]
    %v246 = vld [vmem:[#allocation9 + $0x18] sm:$0xff]
    %v247 = vld [vmem:[#allocation9 + $0x20] sm:$0xff]
    %v248 = vld [vmem:[#allocation9 + $0x28] sm:$0xff]
    %v249 = vld [vmem:[#allocation9 + $0x30] sm:$0xff]
    %v250 = vld [vmem:[#allocation9 + $0x38] sm:$0xff]
    %v251 = vld [vmem:[#allocation9 + $0x40] sm:$0xff]
    %v252 = vld [vmem:[#allocation9 + $0x48] sm:$0xff]
    %v253 = vld [vmem:[#allocation9 + $0x50] sm:$0xff]
    %v254 = vld [vmem:[#allocation9 + $0x58] sm:$0xff]
    %v255 = vld [vmem:[#allocation9 + $0x60] sm:$0xff]
    %v256 = vld [vmem:[#allocation9 + $0x68] sm:$0xff]
    %v257 = vld [vmem:[#allocation9 + $0x70] sm:$0xff]
    %v258 = vld [vmem:[#allocation9 + $0x78] sm:$0xff]
    %259 = vmatprep.subr.mxu0 0.0
    %260 = vmatpush1.msra.mxu0 %v258
    %261 = vmatprep.subr.mxu0 0.0
    %262 = vmatpush1.msra.mxu0 %v257
    %263 = vmatprep.subr.mxu0 0.0
    %264 = vmatpush1.msra.mxu0 %v256
    %265 = vmatprep.subr.mxu0 0.0
    %266 = vmatpush1.msra.mxu0 %v255
    %267 = vmatprep.subr.mxu0 0.0
    %268 = vmatpush1.msra.mxu0 %v254
    %269 = vmatprep.subr.mxu0 0.0
    %270 = vmatpush1.msra.mxu0 %v253
    %271 = vmatprep.subr.mxu0 0.0
    %272 = vmatpush1.msra.mxu0 %v252
    %273 = vmatprep.subr.mxu0 0.0
    %274 = vmatpush1.msra.mxu0 %v251
    %275 = vmatprep.subr.mxu0 0.0
    %276 = vmatpush1.msra.mxu0 %v250
    %277 = vmatprep.subr.mxu0 0.0
    %278 = vmatpush1.msra.mxu0 %v249
    %279 = vmatprep.subr.mxu0 0.0
    %280 = vmatpush1.msra.mxu0 %v248
    %281 = vmatprep.subr.mxu0 0.0
    %282 = vmatpush1.msra.mxu0 %v247
    %283 = vmatprep.subr.mxu0 0.0
    %284 = vmatpush1.msra.mxu0 %v246
    %285 = vmatprep.subr.mxu0 0.0
    %286 = vmatpush1.msra.mxu0 %v245
    %287 = vmatprep.subr.mxu0 0.0
    %288 = vmatpush1.msra.mxu0 %v244
    %289 = vmatprep.subr.mxu0 0.0
    %290 = vmatpush1.msra.mxu0 %v243
    %291 = vmatprep.subr.mxu0 0.0
    %292 = vmatpush2.msra.mxu0 0.0
    %293 = vmatprep.subr.mxu0 0.0
    %294 = vmatpush2.msra.mxu0 0.0
    %295 = vmatprep.subr.mxu0 0.0
    %296 = vmatpush2.msra.mxu0 0.0
    %297 = vmatprep.subr.mxu0 0.0
    %298 = vmatpush2.msra.mxu0 0.0
    %299 = vmatprep.subr.mxu0 0.0
    %300 = vmatpush2.msra.mxu0 0.0
    %301 = vmatprep.subr.mxu0 0.0
    %302 = vmatpush2.msra.mxu0 0.0
    %303 = vmatprep.subr.mxu0 0.0
    %304 = vmatpush2.msra.mxu0 0.0
    %305 = vmatprep.subr.mxu0 0.0
    %306 = vmatpush2.msra.mxu0 0.0
    %307 = vmatprep.subr.mxu0 0.0
    %308 = vmatpush2.msra.mxu0 0.0
    %309 = vmatprep.subr.mxu0 0.0
    %310 = vmatpush2.msra.mxu0 0.0
    %311 = vmatprep.subr.mxu0 0.0
    %312 = vmatpush2.msra.mxu0 0.0
    %313 = vmatprep.subr.mxu0 0.0
    %314 = vmatpush2.msra.mxu0 0.0
    %315 = vmatprep.subr.mxu0 0.0
    %316 = vmatpush2.msra.mxu0 0.0
    %317 = vmatprep.subr.mxu0 0.0
    %318 = vmatpush2.msra.mxu0 0.0
    %319 = vmatprep.subr.mxu0 0.0
    %320 = vmatpush2.msra.mxu0 0.0
    %321 = vmatprep.subr.mxu0 0.0
    %322 = vmatpush2.msra.mxu0 0.0
    %323 = vmatprep.mubr.f32.mxu0 0.0
    %324 = vmatmul.mubr.f32.gmra.mxu0 %v241
    %v325 = vpop.f32.mrf.mxu0
    %v326 = vadd.f32 0.0, %v325
    %v327 = vpop.f32.mrf.mxu0
    %328 = vdwg.mxu0
    %v329 = vadd.f32 %v242, %v326
    %330 = vst [vmem:[#allocation2] sm:$0xff] %v329
    // Predicated region
    $region42: #{tpu_custom_call.1} parent=1 // pred_check
      %p331 = pneg %p75
    $region43: #{tpu_custom_call.1} parent=1 // pred_check_branch
      %333 = sbr.rel (%p331) target = $region45
    $region44: #{tpu_custom_call.1} parent=1 // pred_region
      %v334 = vld [vmem:[#allocation2] sm:$0xff]
      %v335 = vmul.f32 %v334, 0.33333334
      %v336 = vmax.f32 %v335, 1.1754944e-38
      %v337 = vlog2.pop %v336
      %v338 = vmul.f32 %v337, 0.6931472
      %339 = vst [vmem:[#allocation11] sm:$0xff] %v338
    $region45: #{tpu_custom_call.1} parent=1 // pred_fallthru
      _
    // Predicated region
    $region46: #{tpu_custom_call.1} parent=1 // pred_check
      _
    $region47: #{tpu_custom_call.1} parent=1 // pred_check_branch
      %341 = sbr.rel (0) target = $region49
    $region48: #{tpu_custom_call.1} parent=1 // pred_region
      %s343 = ssub.s32 128, 128
      %344 = vsyncadd [#allocation5], %s343
      %s346 = sshll.u32 [#allocation11], 4
      %s347 = int_to_ptr.vmem [resolvable:$true] %s346
      %349 = dma.vmem_to_hbm [thread:$0]  %s347, 128, %s5, [#allocation5]
    $region49: #{tpu_custom_call.1} parent=1 // pred_fallthru
      _
    // Predicated region
    $region50: #{tpu_custom_call.1} parent=1 // pred_check
      _
    $region51: #{tpu_custom_call.1} parent=1 // pred_check_branch
      %351 = sbr.rel (0) target = $region53
    $region52: #{tpu_custom_call.1} parent=1 // pred_region
      %352 = dma.done [#allocation5], 128
    $region53: #{tpu_custom_call.1} parent=1 // pred_fallthru
      _
    %353 = vsyncpa [#allocation4], 1
    %354 = vsyncpa [#allocation7], 1
    %355 = vsyncpa [#allocation10], 1
    %356 = vsyncpa [#allocation5], 1

</llo_original>
